<compile_context>
chip_gen: v7x
topology: tpu7x:2x2x1
jax: 0.10.0
libtpu: 0.0.40
codegen_flags: <defaults>
</compile_context>

<pallas_src>
import jax
import jax.numpy as jnp
from jax import lax
from jax.experimental import pallas as pl
from jax.experimental.pallas import tpu as pltpu

LRELU_SLOPE = 0.2
IN_EPS = 1e-5  # PyTorch InstanceNorm1d default eps


def _round_up(n, m):
    return ((n + m - 1) // m) * m


def _instance_norm_row(h):
    # InstanceNorm1d(1), affine=False: normalize each row over its feature axis.
    # Single-pass biased variance: var = E[h^2] - E[h]^2 (clamped at 0), rsqrt on the EUP.
    d = h.shape[-1]
    inv_d = 1.0 / d
    s1 = jnp.sum(h, axis=-1, keepdims=True)
    s2 = jnp.sum(h * h, axis=-1, keepdims=True)
    mean = s1 * inv_d
    var = jnp.maximum(s2 * inv_d - mean * mean, 0.0)
    return (h - mean) * lax.rsqrt(var + IN_EPS)


def _leaky_relu(h):
    return jnp.where(h >= 0, h, LRELU_SLOPE * h)


def converter_kernel(x_ref, w1_ref, b1_ref, w2_ref, b2_ref, w3_ref, b3_ref, o_ref):
    mm_dtype = w1_ref.dtype
    x = x_ref[...]  # (TB, d_in) in matmul dtype

    # Layer 1: Linear -> InstanceNorm1d(1) -> LeakyReLU(0.2)   (norm/act math in f32)
    h = jnp.dot(x, w1_ref[...], preferred_element_type=jnp.float32) + b1_ref[...]
    h = _leaky_relu(_instance_norm_row(h))

    # Layer 2: Linear -> InstanceNorm1d(1) -> LeakyReLU(0.2)
    h = jnp.dot(h.astype(mm_dtype), w2_ref[...], preferred_element_type=jnp.float32) + b2_ref[...]
    h = _leaky_relu(_instance_norm_row(h))

    # Layer 3: Linear only
    out = jnp.dot(h.astype(mm_dtype), w3_ref[...], preferred_element_type=jnp.float32) + b3_ref[...]
    o_ref[...] = out.astype(o_ref.dtype)


def _vmem_limit_bytes(tb, d_in, d_mid, d_out, mm_bytes):
    # Conservative footprint: double-buffered x/out blocks + (worst case double-buffered)
    # resident weights/biases + live f32 activations. Generous 2x headroom, capped at
    # v7x's 64 MiB physical VMEM, floored at the 32 MiB scoped default.
    weights = 2 * (d_in * d_mid + d_mid * d_mid + d_mid * d_out) * mm_bytes
    biases = 2 * (2 * d_mid + d_out) * 4
    io = 2 * tb * d_in * mm_bytes + 2 * tb * d_out * 4
    acts = 4 * tb * max(d_mid, d_out) * 4
    est = weights + biases + io + acts
    return int(min(max(2 * est, 32 * 1024 * 1024), 64 * 1024 * 1024))


def converter_forward(x, params, *, block_rows=None, matmul_dtype=jnp.bfloat16):
    """x: (B, input_nc) float32. params: w1,b1,w2,b2,w3,b3 with weights (in, out), bias (1, out)."""
    w1, b1 = params["w1"], params["b1"]
    w2, b2 = params["w2"], params["b2"]
    w3, b3 = params["w3"], params["b3"]

    B, d_in = x.shape
    d_mid = w1.shape[1]
    d_out = w3.shape[1]

    # Lane-dense padding of the contracted input dim and the output dim (exact: padded x
    # columns hit zero weight rows; padded output columns are sliced off after the call).
    d_in_p = _round_up(d_in, 128)
    d_out_p = _round_up(d_out, 128)
    if d_in_p != d_in:
        x = jnp.pad(x, ((0, 0), (0, d_in_p - d_in)))
        w1 = jnp.pad(w1, ((0, d_in_p - d_in), (0, 0)))
    if d_out_p != d_out:
        w3 = jnp.pad(w3, ((0, 0), (0, d_out_p - d_out)))
        b3 = jnp.pad(b3, ((0, 0), (0, d_out_p - d_out)))
    # TODO(synk): if d_mid is not a multiple of 128, pad it and mask the padded lanes out of
    # the InstanceNorm mean/var (blind padding of d_mid would change the row statistics).

    # Batch tile: multiple of 16 (bf16 sublane packing), as large as reasonable to feed the MXU.
    if block_rows is None:
        block_rows = min(512, _round_up(max(B, 1), 16))
    tb = _round_up(block_rows, 16)
    b_pad = _round_up(B, tb)
    if b_pad != B:
        x = jnp.pad(x, ((0, b_pad - B), (0, 0)))  # padded rows normalize to finite junk, dropped below

    mm_bytes = jnp.dtype(matmul_dtype).itemsize
    x = x.astype(matmul_dtype)
    w1 = w1.astype(matmul_dtype)
    w2 = w2.astype(matmul_dtype)
    w3 = w3.astype(matmul_dtype)
    b1 = b1.astype(jnp.float32)
    b2 = b2.astype(jnp.float32)
    b3 = b3.astype(jnp.float32)

    grid = (b_pad // tb,)
    resident = lambda shape: pl.BlockSpec(shape, lambda i: (0, 0))  # DMA'd once, stays in VMEM

    out = pl.pallas_call(
        converter_kernel,
        out_shape=jax.ShapeDtypeStruct((b_pad, d_out_p), jnp.float32),
        grid=grid,
        in_specs=[
            pl.BlockSpec((tb, d_in_p), lambda i: (i, 0)),
            resident((d_in_p, d_mid)), resident((1, d_mid)),
            resident((d_mid, d_mid)), resident((1, d_mid)),
            resident((d_mid, d_out_p)), resident((1, d_out_p)),
        ],
        out_specs=pl.BlockSpec((tb, d_out_p), lambda i: (i, 0)),
        compiler_params=pltpu.CompilerParams(
            dimension_semantics=("parallel",),  # shard batch tiles across TCs (v7x megacore)
            vmem_limit_bytes=_vmem_limit_bytes(tb, d_in_p, d_mid, d_out_p, mm_bytes),
        ),
    )(x, w1, b1, w2, b2, w3, b3)

    return out[:B, :d_out]


def converter_reference(x, params, matmul_dtype=jnp.float32):
    """Pure-JAX reference mirroring the PyTorch forward (optionally with matched bf16 operands)."""
    w1 = params["w1"].astype(matmul_dtype)
    w2 = params["w2"].astype(matmul_dtype)
    w3 = params["w3"].astype(matmul_dtype)
    h = jnp.dot(x.astype(matmul_dtype), w1, preferred_element_type=jnp.float32) + params["b1"]
    h = _leaky_relu(_instance_norm_row(h))
    h = jnp.dot(h.astype(matmul_dtype), w2, preferred_element_type=jnp.float32) + params["b2"]
    h = _leaky_relu(_instance_norm_row(h))
    return jnp.dot(h.astype(matmul_dtype), w3, preferred_element_type=jnp.float32) + params["b3"]


def init_params(key, input_nc, output_nc):
    medium = input_nc // 2
    ks = jax.random.split(key, 6)

    def lin(kw, kb, fan_in, fan_out):
        bound = 1.0 / jnp.sqrt(fan_in)
        w = jax.random.uniform(kw, (fan_in, fan_out), jnp.float32, -bound, bound)
        b = jax.random.uniform(kb, (1, fan_out), jnp.float32, -bound, bound)
        return w, b

    w1, b1 = lin(ks[0], ks[1], input_nc, medium)
    w2, b2 = lin(ks[2], ks[3], medium, medium)
    w3, b3 = lin(ks[4], ks[5], medium, output_nc)
    return {"w1": w1, "b1": b1, "w2": w2, "b2": b2, "w3": w3, "b3": b3}


if __name__ == "__main__":
    key = jax.random.PRNGKey(0)
    k_x, k_p = jax.random.split(key)

    B, input_nc, output_nc = 8, 256, 128  # medium = 128; feature dims already 128-aligned
    x = jax.random.normal(k_x, (B, input_nc), jnp.float32)
    params = init_params(k_p, input_nc, output_nc)

    # Exactness check: f32 matmul path vs pure-JAX f32 reference.
    out_f32 = jax.block_until_ready(converter_forward(x, params, matmul_dtype=jnp.float32))
    ref_f32 = converter_reference(x, params, matmul_dtype=jnp.float32)
    assert out_f32.shape == (B, output_nc)
    assert jnp.allclose(out_f32, ref_f32, atol=1e-4, rtol=1e-4)

    # Default fast path: bf16 matmul operands, f32 accumulation (compare vs matched reference).
    out_bf16 = jax.block_until_ready(converter_forward(x, params))
    ref_bf16 = converter_reference(x, params, matmul_dtype=jnp.bfloat16)
    assert out_bf16.shape == (B, output_nc)
    assert jnp.allclose(out_bf16, ref_bf16, atol=1e-2, rtol=1e-2)
    # Sanity: bf16 path stays close to the full-f32 result.
    assert jnp.allclose(out_bf16, ref_f32, atol=1e-1, rtol=1e-1)

    print("KERNEL_OK")
</pallas_src>

<mosaic_0001>
module attributes {stable_mosaic.version = 11 : i64} {
  func.func @converter_kernel(%arg0: i32, %arg1: memref<16x256xf32, #tpu.memory_space<vmem>>, %arg2: memref<256x128xf32, #tpu.memory_space<vmem>>, %arg3: memref<1x128xf32, #tpu.memory_space<vmem>>, %arg4: memref<128x128xf32, #tpu.memory_space<vmem>>, %arg5: memref<1x128xf32, #tpu.memory_space<vmem>>, %arg6: memref<128x128xf32, #tpu.memory_space<vmem>>, %arg7: memref<1x128xf32, #tpu.memory_space<vmem>>, %arg8: memref<16x128xf32, #tpu.memory_space<vmem>>) attributes {dimension_semantics = [#tpu.dimension_semantics<parallel>], iteration_bounds = array<i64: 1>, scalar_prefetch = 0 : i64, scratch_operands = 0 : i64, tpu.core_type = #tpu.core_type<tc>, window_params = [{transform_indices = @transform_0, window_bounds = array<i64: 16, 256>}, {pipeline_mode = #tpu.pipeline_mode<synchronous>, transform_indices = @transform_1, window_bounds = array<i64: 256, 128>}, {pipeline_mode = #tpu.pipeline_mode<synchronous>, transform_indices = @transform_2, window_bounds = array<i64: 1, 128>}, {pipeline_mode = #tpu.pipeline_mode<synchronous>, transform_indices = @transform_3, window_bounds = array<i64: 128, 128>}, {pipeline_mode = #tpu.pipeline_mode<synchronous>, transform_indices = @transform_4, window_bounds = array<i64: 1, 128>}, {pipeline_mode = #tpu.pipeline_mode<synchronous>, transform_indices = @transform_5, window_bounds = array<i64: 128, 128>}, {pipeline_mode = #tpu.pipeline_mode<synchronous>, transform_indices = @transform_6, window_bounds = array<i64: 1, 128>}, {transform_indices = @transform_7, window_bounds = array<i64: 16, 128>}]} {
    %c0 = arith.constant 0 : index
    %c0_0 = arith.constant 0 : index
    %0 = vector.load %arg1[%c0, %c0_0] : memref<16x256xf32, #tpu.memory_space<vmem>>, vector<16x256xf32>
    %c0_1 = arith.constant 0 : index
    %c0_2 = arith.constant 0 : index
    %1 = vector.load %arg2[%c0_1, %c0_2] : memref<256x128xf32, #tpu.memory_space<vmem>>, vector<256x128xf32>
    %cst = arith.constant dense<0.000000e+00> : vector<16x128xf32>
    %2 = tpu.matmul %0, %1, %cst {dimension_numbers = #tpu.dot_dimension_numbers<[1], [0], [0], [1], [0, 0, 1, 1], [], []>} : vector<16x256xf32>, vector<256x128xf32>, vector<16x128xf32> -> vector<16x128xf32>
    %c0_3 = arith.constant 0 : index
    %c0_4 = arith.constant 0 : index
    %3 = vector.load %arg3[%c0_3, %c0_4] : memref<1x128xf32, #tpu.memory_space<vmem>>, vector<1x128xf32>
    %4 = vector.broadcast %3 : vector<1x128xf32> to vector<16x128xf32>
    %5 = arith.addf %2, %4 : vector<16x128xf32>
    %cst_5 = arith.constant dense<0.000000e+00> : vector<16xf32>
    %6 = vector.multi_reduction <add>, %5, %cst_5 [1] : vector<16x128xf32> to vector<16xf32>
    %7 = vector.shape_cast %6 : vector<16xf32> to vector<16x1xf32>
    %8 = arith.mulf %5, %5 : vector<16x128xf32>
    %cst_6 = arith.constant dense<0.000000e+00> : vector<16xf32>
    %9 = vector.multi_reduction <add>, %8, %cst_6 [1] : vector<16x128xf32> to vector<16xf32>
    %10 = vector.shape_cast %9 : vector<16xf32> to vector<16x1xf32>
    %cst_7 = arith.constant 7.812500e-03 : f32
    %11 = vector.broadcast %cst_7 : f32 to vector<16x1xf32>
    %12 = arith.mulf %7, %11 : vector<16x1xf32>
    %cst_8 = arith.constant 7.812500e-03 : f32
    %13 = vector.broadcast %cst_8 : f32 to vector<16x1xf32>
    %14 = arith.mulf %10, %13 : vector<16x1xf32>
    %15 = arith.mulf %12, %12 : vector<16x1xf32>
    %16 = arith.subf %14, %15 : vector<16x1xf32>
    %cst_9 = arith.constant 0.000000e+00 : f32
    %17 = vector.broadcast %cst_9 : f32 to vector<16x1xf32>
    %18 = arith.maximumf %16, %17 : vector<16x1xf32>
    %19 = vector.broadcast %12 : vector<16x1xf32> to vector<16x128xf32>
    %20 = arith.subf %5, %19 : vector<16x128xf32>
    %cst_10 = arith.constant 9.99999974E-6 : f32
    %21 = vector.broadcast %cst_10 : f32 to vector<16x1xf32>
    %22 = arith.addf %18, %21 : vector<16x1xf32>
    %23 = math.rsqrt %22 : vector<16x1xf32>
    %24 = vector.broadcast %23 : vector<16x1xf32> to vector<16x128xf32>
    %25 = arith.mulf %20, %24 : vector<16x128xf32>
    %cst_11 = arith.constant 0.000000e+00 : f32
    %26 = vector.broadcast %cst_11 : f32 to vector<16x128xf32>
    %27 = arith.cmpf oge, %25, %26 : vector<16x128xf32>
    %cst_12 = arith.constant 2.000000e-01 : f32
    %28 = vector.broadcast %cst_12 : f32 to vector<16x128xf32>
    %29 = arith.mulf %28, %25 : vector<16x128xf32>
    %30 = arith.select %27, %25, %29 : vector<16x128xi1>, vector<16x128xf32>
    %c0_13 = arith.constant 0 : index
    %c0_14 = arith.constant 0 : index
    %31 = vector.load %arg4[%c0_13, %c0_14] : memref<128x128xf32, #tpu.memory_space<vmem>>, vector<128x128xf32>
    %cst_15 = arith.constant dense<0.000000e+00> : vector<16x128xf32>
    %32 = tpu.matmul %30, %31, %cst_15 {dimension_numbers = #tpu.dot_dimension_numbers<[1], [0], [0], [1], [0, 0, 1, 1], [], []>} : vector<16x128xf32>, vector<128x128xf32>, vector<16x128xf32> -> vector<16x128xf32>
    %c0_16 = arith.constant 0 : index
    %c0_17 = arith.constant 0 : index
    %33 = vector.load %arg5[%c0_16, %c0_17] : memref<1x128xf32, #tpu.memory_space<vmem>>, vector<1x128xf32>
    %34 = vector.broadcast %33 : vector<1x128xf32> to vector<16x128xf32>
    %35 = arith.addf %32, %34 : vector<16x128xf32>
    %cst_18 = arith.constant dense<0.000000e+00> : vector<16xf32>
    %36 = vector.multi_reduction <add>, %35, %cst_18 [1] : vector<16x128xf32> to vector<16xf32>
    %37 = vector.shape_cast %36 : vector<16xf32> to vector<16x1xf32>
    %38 = arith.mulf %35, %35 : vector<16x128xf32>
    %cst_19 = arith.constant dense<0.000000e+00> : vector<16xf32>
    %39 = vector.multi_reduction <add>, %38, %cst_19 [1] : vector<16x128xf32> to vector<16xf32>
    %40 = vector.shape_cast %39 : vector<16xf32> to vector<16x1xf32>
    %cst_20 = arith.constant 7.812500e-03 : f32
    %41 = vector.broadcast %cst_20 : f32 to vector<16x1xf32>
    %42 = arith.mulf %37, %41 : vector<16x1xf32>
    %cst_21 = arith.constant 7.812500e-03 : f32
    %43 = vector.broadcast %cst_21 : f32 to vector<16x1xf32>
    %44 = arith.mulf %40, %43 : vector<16x1xf32>
    %45 = arith.mulf %42, %42 : vector<16x1xf32>
    %46 = arith.subf %44, %45 : vector<16x1xf32>
    %cst_22 = arith.constant 0.000000e+00 : f32
    %47 = vector.broadcast %cst_22 : f32 to vector<16x1xf32>
    %48 = arith.maximumf %46, %47 : vector<16x1xf32>
    %49 = vector.broadcast %42 : vector<16x1xf32> to vector<16x128xf32>
    %50 = arith.subf %35, %49 : vector<16x128xf32>
    %cst_23 = arith.constant 9.99999974E-6 : f32
    %51 = vector.broadcast %cst_23 : f32 to vector<16x1xf32>
    %52 = arith.addf %48, %51 : vector<16x1xf32>
    %53 = math.rsqrt %52 : vector<16x1xf32>
    %54 = vector.broadcast %53 : vector<16x1xf32> to vector<16x128xf32>
    %55 = arith.mulf %50, %54 : vector<16x128xf32>
    %cst_24 = arith.constant 0.000000e+00 : f32
    %56 = vector.broadcast %cst_24 : f32 to vector<16x128xf32>
    %57 = arith.cmpf oge, %55, %56 : vector<16x128xf32>
    %cst_25 = arith.constant 2.000000e-01 : f32
    %58 = vector.broadcast %cst_25 : f32 to vector<16x128xf32>
    %59 = arith.mulf %58, %55 : vector<16x128xf32>
    %60 = arith.select %57, %55, %59 : vector<16x128xi1>, vector<16x128xf32>
    %c0_26 = arith.constant 0 : index
    %c0_27 = arith.constant 0 : index
    %61 = vector.load %arg6[%c0_26, %c0_27] : memref<128x128xf32, #tpu.memory_space<vmem>>, vector<128x128xf32>
    %cst_28 = arith.constant dense<0.000000e+00> : vector<16x128xf32>
    %62 = tpu.matmul %60, %61, %cst_28 {dimension_numbers = #tpu.dot_dimension_numbers<[1], [0], [0], [1], [0, 0, 1, 1], [], []>} : vector<16x128xf32>, vector<128x128xf32>, vector<16x128xf32> -> vector<16x128xf32>
    %c0_29 = arith.constant 0 : index
    %c0_30 = arith.constant 0 : index
    %63 = vector.load %arg7[%c0_29, %c0_30] : memref<1x128xf32, #tpu.memory_space<vmem>>, vector<1x128xf32>
    %64 = vector.broadcast %63 : vector<1x128xf32> to vector<16x128xf32>
    %65 = arith.addf %62, %64 : vector<16x128xf32>
    %c0_31 = arith.constant 0 : index
    %c0_32 = arith.constant 0 : index
    %66 = vector.load %arg8[%c0_31, %c0_32] : memref<16x128xf32, #tpu.memory_space<vmem>>, vector<16x128xf32>
    tpu.vector_store %arg8[%c0_31, %c0_32], %65 {strides = array<i32>} : memref<16x128xf32, #tpu.memory_space<vmem>>, vector<16x128xf32>,
    return
  }
  func.func @transform_0(%arg0: i32) -> (i32, i32) {
    %c0_i32 = arith.constant 0 : i32
    %c0_i32_0 = arith.constant 0 : i32
    return %arg0, %c0_i32 : i32, i32
  }
  func.func @transform_1(%arg0: i32) -> (i32, i32) {
    %c0_i32 = arith.constant 0 : i32
    %c0_i32_0 = arith.constant 0 : i32
    %c0_i32_1 = arith.constant 0 : i32
    return %c0_i32, %c0_i32_0 : i32, i32
  }
  func.func @transform_2(%arg0: i32) -> (i32, i32) {
    %c0_i32 = arith.constant 0 : i32
    %c0_i32_0 = arith.constant 0 : i32
    %c0_i32_1 = arith.constant 0 : i32
    return %c0_i32, %c0_i32_0 : i32, i32
  }
  func.func @transform_3(%arg0: i32) -> (i32, i32) {
    %c0_i32 = arith.constant 0 : i32
    %c0_i32_0 = arith.constant 0 : i32
    %c0_i32_1 = arith.constant 0 : i32
    return %c0_i32, %c0_i32_0 : i32, i32
  }
  func.func @transform_4(%arg0: i32) -> (i32, i32) {
    %c0_i32 = arith.constant 0 : i32
    %c0_i32_0 = arith.constant 0 : i32
    %c0_i32_1 = arith.constant 0 : i32
    return %c0_i32, %c0_i32_0 : i32, i32
  }
  func.func @transform_5(%arg0: i32) -> (i32, i32) {
    %c0_i32 = arith.constant 0 : i32
    %c0_i32_0 = arith.constant 0 : i32
    %c0_i32_1 = arith.constant 0 : i32
    return %c0_i32, %c0_i32_0 : i32, i32
  }
  func.func @transform_6(%arg0: i32) -> (i32, i32) {
    %c0_i32 = arith.constant 0 : i32
    %c0_i32_0 = arith.constant 0 : i32
    %c0_i32_1 = arith.constant 0 : i32
    return %c0_i32, %c0_i32_0 : i32, i32
  }
  func.func @transform_7(%arg0: i32) -> (i32, i32) {
    %c0_i32 = arith.constant 0 : i32
    %c0_i32_0 = arith.constant 0 : i32
    return %arg0, %c0_i32 : i32, i32
  }
}

</mosaic_0001>

<llo_original>
// kernel: tpu_custom_call.1
$region0: #{tpu_custom_call.1}
  #allocation0 [shape = 'u32[]', space=smem, size = 0x4, offset = 0x4, fixed_abs, tag = 'smem constant byte address 0x4 - core index']
  #allocation1 [shape = 'u32[144,128]{1,0:T(1,128)}', space=vmem, size = 0x12000, scoped, tag = 'internal scratch']
  %s0 = inlined_call_operand.hbm [shape: f32[16,256], index: 0, kind: input, shape index: {}]
  %s1 = inlined_call_operand.hbm [shape: f32[256,128], index: 1, kind: input, shape index: {}]
  %s2 = inlined_call_operand.vmem [shape: f32[1,128], index: 2, kind: input, shape index: {}]
  %s3 = inlined_call_operand.hbm [shape: f32[128,128], index: 3, kind: input, shape index: {}]
  %s4 = inlined_call_operand.vmem [shape: f32[1,128], index: 4, kind: input, shape index: {}]
  %s5 = inlined_call_operand.hbm [shape: f32[128,128], index: 5, kind: input, shape index: {}]
  %s6 = inlined_call_operand.vmem [shape: f32[1,128], index: 6, kind: input, shape index: {}]
  %s7 = inlined_call_operand.hbm [shape: f32[16,128], index: 7, kind: output, shape index: {}]
  %s8 = sld [smem:[#allocation0]]
  $region54: #{tpu_custom_call.1} parent=0
    _
  %s10 = ssub.s32 1, %s8
  %s11 = scalar_select 0, %s10, %s8
  $region1: #{tpu_custom_call.1} parent=0
    #allocation2 [shape = 'u8[16384]{0}', space=vmem, size = 0x4000, scoped, tag = 'input window, operand 0, single buffered']
    #allocation3 [shape = 's32[1]{0}', space=sflag, size = 0x4, scoped, tag = 'scoped memory for tpu_custom_call.1']
    #allocation4 [shape = 's32[1]{0}', space=sflag, size = 0x4, scoped, tag = 'scoped memory for tpu_custom_call.1']
    #allocation5 [shape = 'u8[131072]{0}', space=vmem, size = 0x20000, scoped, tag = 'input window, operand 1, single buffered']
    #allocation6 [shape = 's32[1]{0}', space=sflag, size = 0x4, scoped, tag = 'scoped memory for tpu_custom_call.1']
    #allocation7 [shape = 'u8[65536]{0}', space=vmem, size = 0x10000, scoped, tag = 'input window, operand 3, single buffered']
    #allocation8 [shape = 'u8[65536]{0}', space=vmem, size = 0x10000, scoped, tag = 'input window, operand 5, single buffered']
    #allocation9 [shape = 's32[1]{0}', space=sflag, size = 0x4, scoped, tag = 'scoped memory for tpu_custom_call.1']
    #allocation10 [shape = 'u8[8192]{0}', space=vmem, size = 0x2000, scoped, tag = 'output window, operand 0, single buffered']
    %12 = vsyncpa [#allocation3], 0
    %13 = vsyncpa [#allocation6], 0
    %14 = vsyncpa [#allocation9], 0
    %15 = vsyncpa [#allocation4], 0
    // Predicated region
    $region2: #{tpu_custom_call.1} parent=1 // pred_check
      _
    $region3: #{tpu_custom_call.1} parent=1 // pred_check_branch
      %17 = sbr.rel (0) target = $region5
    $region4: #{tpu_custom_call.1} parent=1 // pred_region
      %s19 = ssub.s32 512, 512
      %20 = vsyncadd [#allocation3], %s19
      %s21 = sshll.u32 [#allocation2], 4
      %s22 = int_to_ptr.vmem [resolvable:$true] %s21
      %27 = dma.hbm_to_vmem [thread:$0]  %s0, 512, %s22, [#allocation3], 256, 256, 16
    $region5: #{tpu_custom_call.1} parent=1 // pred_fallthru
      _
    // Predicated region
    $region6: #{tpu_custom_call.1} parent=1 // pred_check
      _
    $region7: #{tpu_custom_call.1} parent=1 // pred_check_branch
      %29 = sbr.rel (0) target = $region9
    $region8: #{tpu_custom_call.1} parent=1 // pred_region
      %s31 = ssub.s32 4096, 4096
      %32 = vsyncadd [#allocation6], %s31
      %s33 = sshll.u32 [#allocation5], 4
      %s34 = int_to_ptr.vmem [resolvable:$true] %s33
      %39 = dma.hbm_to_vmem [thread:$0]  %s1, 4096, %s34, [#allocation6], 128, 128, 8
    $region9: #{tpu_custom_call.1} parent=1 // pred_fallthru
      _
    // Predicated region
    $region10: #{tpu_custom_call.1} parent=1 // pred_check
      _
    $region11: #{tpu_custom_call.1} parent=1 // pred_check_branch
      %41 = sbr.rel (0) target = $region13
    $region12: #{tpu_custom_call.1} parent=1 // pred_region
      _
    $region13: #{tpu_custom_call.1} parent=1 // pred_fallthru
      _
    // Predicated region
    $region14: #{tpu_custom_call.1} parent=1 // pred_check
      _
    $region15: #{tpu_custom_call.1} parent=1 // pred_check_branch
      %43 = sbr.rel (0) target = $region17
    $region16: #{tpu_custom_call.1} parent=1 // pred_region
      %s45 = ssub.s32 2048, 2048
      %46 = vsyncadd [#allocation6], %s45
      %s47 = sshll.u32 [#allocation7], 4
      %s48 = int_to_ptr.vmem [resolvable:$true] %s47
      %53 = dma.hbm_to_vmem [thread:$0]  %s3, 2048, %s48, [#allocation6], 128, 128, 8
    $region17: #{tpu_custom_call.1} parent=1 // pred_fallthru
      _
    // Predicated region
    $region18: #{tpu_custom_call.1} parent=1 // pred_check
      _
    $region19: #{tpu_custom_call.1} parent=1 // pred_check_branch
      %55 = sbr.rel (0) target = $region21
    $region20: #{tpu_custom_call.1} parent=1 // pred_region
      _
    $region21: #{tpu_custom_call.1} parent=1 // pred_fallthru
      _
    // Predicated region
    $region22: #{tpu_custom_call.1} parent=1 // pred_check
      _
    $region23: #{tpu_custom_call.1} parent=1 // pred_check_branch
      %57 = sbr.rel (0) target = $region25
    $region24: #{tpu_custom_call.1} parent=1 // pred_region
      %s59 = ssub.s32 2048, 2048
      %60 = vsyncadd [#allocation9], %s59
      %s61 = sshll.u32 [#allocation8], 4
      %s62 = int_to_ptr.vmem [resolvable:$true] %s61
      %67 = dma.hbm_to_vmem [thread:$0]  %s5, 2048, %s62, [#allocation9], 128, 128, 8
    $region25: #{tpu_custom_call.1} parent=1 // pred_fallthru
      _
    // Predicated region
    $region26: #{tpu_custom_call.1} parent=1 // pred_check
      _
    $region27: #{tpu_custom_call.1} parent=1 // pred_check_branch
      %69 = sbr.rel (0) target = $region29
    $region28: #{tpu_custom_call.1} parent=1 // pred_region
      _
    $region29: #{tpu_custom_call.1} parent=1 // pred_fallthru
      _
    // Predicated region
    $region30: #{tpu_custom_call.1} parent=1 // pred_check
      _
    $region31: #{tpu_custom_call.1} parent=1 // pred_check_branch
      %71 = sbr.rel (0) target = $region33
    $region32: #{tpu_custom_call.1} parent=1 // pred_region
      %72 = dma.done [#allocation3], 512
    $region33: #{tpu_custom_call.1} parent=1 // pred_fallthru
      _
    // Predicated region
    $region34: #{tpu_custom_call.1} parent=1 // pred_check
      _
    $region35: #{tpu_custom_call.1} parent=1 // pred_check_branch
      %74 = sbr.rel (0) target = $region37
    $region36: #{tpu_custom_call.1} parent=1 // pred_region
      %75 = dma.done [#allocation6], 4096
    $region37: #{tpu_custom_call.1} parent=1 // pred_fallthru
      _
    // Predicated region
    $region38: #{tpu_custom_call.1} parent=1 // pred_check
      _
    $region39: #{tpu_custom_call.1} parent=1 // pred_check_branch
      %77 = sbr.rel (0) target = $region41
    $region40: #{tpu_custom_call.1} parent=1 // pred_region
      %78 = dma.done [#allocation6], 2048
    $region41: #{tpu_custom_call.1} parent=1 // pred_fallthru
      _
    // Predicated region
    $region42: #{tpu_custom_call.1} parent=1 // pred_check
      _
    $region43: #{tpu_custom_call.1} parent=1 // pred_check_branch
      %80 = sbr.rel (0) target = $region45
    $region44: #{tpu_custom_call.1} parent=1 // pred_region
      %81 = dma.done [#allocation9], 2048
    $region45: #{tpu_custom_call.1} parent=1 // pred_fallthru
      _
    %v82 = vld [vmem:[#allocation2] sm:$0xff]
    %v83 = vld [vmem:[#allocation2 + $0x8] sm:$0xff]
    %v84 = vld [vmem:[#allocation2 + $0x10] sm:$0xff]
    %v85 = vld [vmem:[#allocation2 + $0x18] sm:$0xff]
    %v86 = vld [vmem:[#allocation5] sm:$0xff]
    %v87 = vld [vmem:[#allocation5 + $0x8] sm:$0xff]
    %v88 = vld [vmem:[#allocation5 + $0x10] sm:$0xff]
    %v89 = vld [vmem:[#allocation5 + $0x18] sm:$0xff]
    %v90 = vld [vmem:[#allocation5 + $0x20] sm:$0xff]
    %v91 = vld [vmem:[#allocation5 + $0x28] sm:$0xff]
    %v92 = vld [vmem:[#allocation5 + $0x30] sm:$0xff]
    %v93 = vld [vmem:[#allocation5 + $0x38] sm:$0xff]
    %v94 = vld [vmem:[#allocation5 + $0x40] sm:$0xff]
    %v95 = vld [vmem:[#allocation5 + $0x48] sm:$0xff]
    %v96 = vld [vmem:[#allocation5 + $0x50] sm:$0xff]
    %v97 = vld [vmem:[#allocation5 + $0x58] sm:$0xff]
    %v98 = vld [vmem:[#allocation5 + $0x60] sm:$0xff]
    %v99 = vld [vmem:[#allocation5 + $0x68] sm:$0xff]
    %v100 = vld [vmem:[#allocation5 + $0x70] sm:$0xff]
    %v101 = vld [vmem:[#allocation5 + $0x78] sm:$0xff]
    %v102 = vld [vmem:[#allocation5 + $0x80] sm:$0xff]
    %v103 = vld [vmem:[#allocation5 + $0x88] sm:$0xff]
    %v104 = vld [vmem:[#allocation5 + $0x90] sm:$0xff]
    %v105 = vld [vmem:[#allocation5 + $0x98] sm:$0xff]
    %v106 = vld [vmem:[#allocation5 + $0xa0] sm:$0xff]
    %v107 = vld [vmem:[#allocation5 + $0xa8] sm:$0xff]
    %v108 = vld [vmem:[#allocation5 + $0xb0] sm:$0xff]
    %v109 = vld [vmem:[#allocation5 + $0xb8] sm:$0xff]
    %v110 = vld [vmem:[#allocation5 + $0xc0] sm:$0xff]
    %v111 = vld [vmem:[#allocation5 + $0xc8] sm:$0xff]
    %v112 = vld [vmem:[#allocation5 + $0xd0] sm:$0xff]
    %v113 = vld [vmem:[#allocation5 + $0xd8] sm:$0xff]
    %v114 = vld [vmem:[#allocation5 + $0xe0] sm:$0xff]
    %v115 = vld [vmem:[#allocation5 + $0xe8] sm:$0xff]
    %v116 = vld [vmem:[#allocation5 + $0xf0] sm:$0xff]
    %v117 = vld [vmem:[#allocation5 + $0xf8] sm:$0xff]
    %v118 = vld [vmem:[%s2] sm:$0x1]
    %v120 = vlaneseq
    %v121 = vshrl.u32 %v120, 7
    %v122 = vsub.s32 0, %v121
    %v123 = vrot.slane %v118, %v122
    %125 = vmatprep.subr.mxu0 0.0
    %126 = vmatpush1.msra.mxu0 %v86
    %127 = vmatprep.subr.mxu0 0.0
    %128 = vmatpush1.msra.mxu0 %v87
    %129 = vmatprep.subr.mxu0 0.0
    %130 = vmatpush1.msra.mxu0 %v88
    %131 = vmatprep.subr.mxu0 0.0
    %132 = vmatpush1.msra.mxu0 %v89
    %133 = vmatprep.subr.mxu0 0.0
    %134 = vmatpush1.msra.mxu0 %v90
    %135 = vmatprep.subr.mxu0 0.0
    %136 = vmatpush1.msra.mxu0 %v91
    %137 = vmatprep.subr.mxu0 0.0
    %138 = vmatpush1.msra.mxu0 %v92
    %139 = vmatprep.subr.mxu0 0.0
    %140 = vmatpush1.msra.mxu0 %v93
    %141 = vmatprep.subr.mxu0 0.0
    %142 = vmatpush1.msra.mxu0 %v94
    %143 = vmatprep.subr.mxu0 0.0
    %144 = vmatpush1.msra.mxu0 %v95
    %145 = vmatprep.subr.mxu0 0.0
    %146 = vmatpush1.msra.mxu0 %v96
    %147 = vmatprep.subr.mxu0 0.0
    %148 = vmatpush1.msra.mxu0 %v97
    %149 = vmatprep.subr.mxu0 0.0
    %150 = vmatpush1.msra.mxu0 %v98
    %151 = vmatprep.subr.mxu0 0.0
    %152 = vmatpush1.msra.mxu0 %v99
    %153 = vmatprep.subr.mxu0 0.0
    %154 = vmatpush1.msra.mxu0 %v100
    %155 = vmatprep.subr.mxu0 0.0
    %156 = vmatpush1.msra.mxu0 %v101
    %157 = vmatprep.subr.mxu0 0.0
    %158 = vmatpush1.msra.mxu0 %v102
    %159 = vmatprep.subr.mxu0 0.0
    %160 = vmatpush1.msra.mxu0 %v103
    %161 = vmatprep.subr.mxu0 0.0
    %162 = vmatpush1.msra.mxu0 %v104
    %163 = vmatprep.subr.mxu0 0.0
    %164 = vmatpush1.msra.mxu0 %v105
    %165 = vmatprep.subr.mxu0 0.0
    %166 = vmatpush1.msra.mxu0 %v106
    %167 = vmatprep.subr.mxu0 0.0
    %168 = vmatpush1.msra.mxu0 %v107
    %169 = vmatprep.subr.mxu0 0.0
    %170 = vmatpush1.msra.mxu0 %v108
    %171 = vmatprep.subr.mxu0 0.0
    %172 = vmatpush1.msra.mxu0 %v109
    %173 = vmatprep.subr.mxu0 0.0
    %174 = vmatpush1.msra.mxu0 %v110
    %175 = vmatprep.subr.mxu0 0.0
    %176 = vmatpush1.msra.mxu0 %v111
    %177 = vmatprep.subr.mxu0 0.0
    %178 = vmatpush1.msra.mxu0 %v112
    %179 = vmatprep.subr.mxu0 0.0
    %180 = vmatpush1.msra.mxu0 %v113
    %181 = vmatprep.subr.mxu0 0.0
    %182 = vmatpush1.msra.mxu0 %v114
    %183 = vmatprep.subr.mxu0 0.0
    %184 = vmatpush1.msra.mxu0 %v115
    %185 = vmatprep.subr.mxu0 0.0
    %186 = vmatpush1.msra.mxu0 %v116
    %187 = vmatprep.subr.mxu0 0.0
    %188 = vmatpush1.msra.mxu0 %v117
    %189 = vmatprep.mubr.f32.mxu0 %v83
    %190 = vmatmul.mubr.f32.gmra.mrb[0].mxu0 %v82
    %v191 = vpop.f32.mrb[0].mxu0
    %v192 = vadd.f32 %v123, %v191
    %v193 = vpop.f32.mrb[0].mxu0
    %194 = vmatprep.mubr.f32.mxu0 %v85
    %195 = vmatmul.mubr.f32.gmra.mrb[0].mxu0 %v84
    %v196 = vpop.f32.mrb[0].mxu0
    %v197 = vadd.f32 %v123, %v196
    %v198 = vpop.f32.mrb[0].mxu0
    %199 = vdwg.mxu0
    %200 = vadd.xlane.f32.xlu0 %v192
    %v201 = vpop.xlane.xlu0 %200
    %202 = vadd.xlane.f32.xlu0 %v197
    %v203 = vpop.xlane.xlu0 %202
    %v204 = vmul.f32 %v192, %v192
    %v205 = vmul.f32 %v197, %v197
    %206 = vadd.xlane.f32.xlu0 %v204
    %v207 = vpop.xlane.xlu0 %206
    %208 = vadd.xlane.f32.xlu0 %v205
    %v209 = vpop.xlane.xlu0 %208
    %v210 = vmul.f32 %v201, 0.0078125
    %v211 = vmul.f32 %v203, 0.0078125
    %v212 = vmul.f32 %v207, 0.0078125
    %v213 = vmul.f32 %v209, 0.0078125
    %v214 = vmul.f32 %v210, %v210
    %v215 = vmul.f32 %v211, %v211
    %v216 = vsub.f32 %v212, %v214
    %v217 = vsub.f32 %v213, %v215
    %v218 = vmax.f32 %v216, 0.0
    %v219 = vmax.f32 %v217, 0.0
    %v220 = vsub.f32 %v192, %v210
    %v221 = vsub.f32 %v197, %v211
    %v222 = vadd.f32 %v218, 1e-05
    %v223 = vadd.f32 %v219, 1e-05
    %v224 = vrsqrt.pop %v222
    %v225 = vrsqrt.pop %v223
    %v226 = vmul.f32 %v220, %v224
    %v227 = vmul.f32 %v221, %v225
    %vm228 = vcmp.ge.f32.partialorder %v226, 0.0
    %vm229 = vcmp.ge.f32.partialorder %v227, 0.0
    %v230 = vmul.f32 %v226, 0.2
    %v231 = vmul.f32 %v227, 0.2
    %v232 = vsel %vm228, %v226, %v230
    %v233 = vsel %vm229, %v227, %v231
    %v234 = vld [vmem:[#allocation7] sm:$0xff]
    %v235 = vld [vmem:[#allocation7 + $0x8] sm:$0xff]
    %v236 = vld [vmem:[#allocation7 + $0x10] sm:$0xff]
    %v237 = vld [vmem:[#allocation7 + $0x18] sm:$0xff]
    %v238 = vld [vmem:[#allocation7 + $0x20] sm:$0xff]
    %v239 = vld [vmem:[#allocation7 + $0x28] sm:$0xff]
    %v240 = vld [vmem:[#allocation7 + $0x30] sm:$0xff]
    %v241 = vld [vmem:[#allocation7 + $0x38] sm:$0xff]
    %v242 = vld [vmem:[#allocation7 + $0x40] sm:$0xff]
    %v243 = vld [vmem:[#allocation7 + $0x48] sm:$0xff]
    %v244 = vld [vmem:[#allocation7 + $0x50] sm:$0xff]
    %v245 = vld [vmem:[#allocation7 + $0x58] sm:$0xff]
    %v246 = vld [vmem:[#allocation7 + $0x60] sm:$0xff]
    %v247 = vld [vmem:[#allocation7 + $0x68] sm:$0xff]
    %v248 = vld [vmem:[#allocation7 + $0x70] sm:$0xff]
    %v249 = vld [vmem:[#allocation7 + $0x78] sm:$0xff]
    %v250 = vld [vmem:[%s4] sm:$0x1]
    %v252 = vlaneseq
    %v253 = vshrl.u32 %v252, 7
    %v254 = vsub.s32 0, %v253
    %v255 = vrot.slane %v250, %v254
    %257 = vmatprep.subr.mxu0 0.0
    %258 = vmatpush1.msra.mxu0 %v234
    %259 = vmatprep.subr.mxu0 0.0
    %260 = vmatpush1.msra.mxu0 %v235
    %261 = vmatprep.subr.mxu0 0.0
    %262 = vmatpush1.msra.mxu0 %v236
    %263 = vmatprep.subr.mxu0 0.0
    %264 = vmatpush1.msra.mxu0 %v237
    %265 = vmatprep.subr.mxu0 0.0
    %266 = vmatpush1.msra.mxu0 %v238
    %267 = vmatprep.subr.mxu0 0.0
    %268 = vmatpush1.msra.mxu0 %v239
    %269 = vmatprep.subr.mxu0 0.0
    %270 = vmatpush1.msra.mxu0 %v240
    %271 = vmatprep.subr.mxu0 0.0
    %272 = vmatpush1.msra.mxu0 %v241
    %273 = vmatprep.subr.mxu0 0.0
    %274 = vmatpush1.msra.mxu0 %v242
    %275 = vmatprep.subr.mxu0 0.0
    %276 = vmatpush1.msra.mxu0 %v243
    %277 = vmatprep.subr.mxu0 0.0
    %278 = vmatpush1.msra.mxu0 %v244
    %279 = vmatprep.subr.mxu0 0.0
    %280 = vmatpush1.msra.mxu0 %v245
    %281 = vmatprep.subr.mxu0 0.0
    %282 = vmatpush1.msra.mxu0 %v246
    %283 = vmatprep.subr.mxu0 0.0
    %284 = vmatpush1.msra.mxu0 %v247
    %285 = vmatprep.subr.mxu0 0.0
    %286 = vmatpush1.msra.mxu0 %v248
    %287 = vmatprep.subr.mxu0 0.0
    %288 = vmatpush1.msra.mxu0 %v249
    %289 = vmatprep.subr.mxu0 0.0
    %290 = vmatpush1.msra.mxu0 0.0
    %291 = vmatprep.subr.mxu0 0.0
    %292 = vmatpush1.msra.mxu0 0.0
    %293 = vmatprep.subr.mxu0 0.0
    %294 = vmatpush1.msra.mxu0 0.0
    %295 = vmatprep.subr.mxu0 0.0
    %296 = vmatpush1.msra.mxu0 0.0
    %297 = vmatprep.subr.mxu0 0.0
    %298 = vmatpush1.msra.mxu0 0.0
    %299 = vmatprep.subr.mxu0 0.0
    %300 = vmatpush1.msra.mxu0 0.0
    %301 = vmatprep.subr.mxu0 0.0
    %302 = vmatpush1.msra.mxu0 0.0
    %303 = vmatprep.subr.mxu0 0.0
    %304 = vmatpush1.msra.mxu0 0.0
    %305 = vmatprep.subr.mxu0 0.0
    %306 = vmatpush1.msra.mxu0 0.0
    %307 = vmatprep.subr.mxu0 0.0
    %308 = vmatpush1.msra.mxu0 0.0
    %309 = vmatprep.subr.mxu0 0.0
    %310 = vmatpush1.msra.mxu0 0.0
    %311 = vmatprep.subr.mxu0 0.0
    %312 = vmatpush1.msra.mxu0 0.0
    %313 = vmatprep.subr.mxu0 0.0
    %314 = vmatpush1.msra.mxu0 0.0
    %315 = vmatprep.subr.mxu0 0.0
    %316 = vmatpush1.msra.mxu0 0.0
    %317 = vmatprep.subr.mxu0 0.0
    %318 = vmatpush1.msra.mxu0 0.0
    %319 = vmatprep.subr.mxu0 0.0
    %320 = vmatpush1.msra.mxu0 0.0
    %321 = vmatprep.mubr.f32.mxu0 0.0
    %322 = vmatmul.mubr.f32.gmra.mrb[0].mxu0 %v232
    %v323 = vpop.f32.mrb[0].mxu0
    %v324 = vadd.f32 %v255, %v323
    %v325 = vpop.f32.mrb[0].mxu0
    %326 = vmatprep.mubr.f32.mxu0 0.0
    %327 = vmatmul.mubr.f32.gmra.mrb[0].mxu0 %v233
    %v328 = vpop.f32.mrb[0].mxu0
    %v329 = vadd.f32 %v255, %v328
    %v330 = vpop.f32.mrb[0].mxu0
    %331 = vdwg.mxu0
    %332 = vadd.xlane.f32.xlu0 %v324
    %v333 = vpop.xlane.xlu0 %332
    %334 = vadd.xlane.f32.xlu0 %v329
    %v335 = vpop.xlane.xlu0 %334
    %v336 = vmul.f32 %v324, %v324
    %v337 = vmul.f32 %v329, %v329
    %338 = vadd.xlane.f32.xlu0 %v336
    %v339 = vpop.xlane.xlu0 %338
    %340 = vadd.xlane.f32.xlu0 %v337
    %v341 = vpop.xlane.xlu0 %340
    %v342 = vmul.f32 %v333, 0.0078125
    %v343 = vmul.f32 %v335, 0.0078125
    %v344 = vmul.f32 %v339, 0.0078125
    %v345 = vmul.f32 %v341, 0.0078125
    %v346 = vmul.f32 %v342, %v342
    %v347 = vmul.f32 %v343, %v343
    %v348 = vsub.f32 %v344, %v346
    %v349 = vsub.f32 %v345, %v347
    %v350 = vmax.f32 %v348, 0.0
    %v351 = vmax.f32 %v349, 0.0
    %v352 = vsub.f32 %v324, %v342
    %v353 = vsub.f32 %v329, %v343
    %v354 = vadd.f32 %v350, 1e-05
    %v355 = vadd.f32 %v351, 1e-05
    %v356 = vrsqrt.pop %v354
    %v357 = vrsqrt.pop %v355
    %v358 = vmul.f32 %v352, %v356
    %v359 = vmul.f32 %v353, %v357
    %vm360 = vcmp.ge.f32.partialorder %v358, 0.0
    %vm361 = vcmp.ge.f32.partialorder %v359, 0.0
    %v362 = vmul.f32 %v358, 0.2
    %v363 = vmul.f32 %v359, 0.2
    %v364 = vsel %vm360, %v358, %v362
    %v365 = vsel %vm361, %v359, %v363
    %v366 = vld [vmem:[#allocation8] sm:$0xff]
    %v367 = vld [vmem:[#allocation8 + $0x8] sm:$0xff]
    %v368 = vld [vmem:[#allocation8 + $0x10] sm:$0xff]
    %v369 = vld [vmem:[#allocation8 + $0x18] sm:$0xff]
    %v370 = vld [vmem:[#allocation8 + $0x20] sm:$0xff]
    %v371 = vld [vmem:[#allocation8 + $0x28] sm:$0xff]
    %v372 = vld [vmem:[#allocation8 + $0x30] sm:$0xff]
    %v373 = vld [vmem:[#allocation8 + $0x38] sm:$0xff]
    %v374 = vld [vmem:[#allocation8 + $0x40] sm:$0xff]
    %v375 = vld [vmem:[#allocation8 + $0x48] sm:$0xff]
    %v376 = vld [vmem:[#allocation8 + $0x50] sm:$0xff]
    %v377 = vld [vmem:[#allocation8 + $0x58] sm:$0xff]
    %v378 = vld [vmem:[#allocation8 + $0x60] sm:$0xff]
    %v379 = vld [vmem:[#allocation8 + $0x68] sm:$0xff]
    %v380 = vld [vmem:[#allocation8 + $0x70] sm:$0xff]
    %v381 = vld [vmem:[#allocation8 + $0x78] sm:$0xff]
    %v382 = vld [vmem:[%s6] sm:$0x1]
    %v384 = vlaneseq
    %v385 = vshrl.u32 %v384, 7
    %v386 = vsub.s32 0, %v385
    %v387 = vrot.slane %v382, %v386
    %389 = vmatprep.subr.mxu0 0.0
    %390 = vmatpush1.msra.mxu0 %v366
    %391 = vmatprep.subr.mxu0 0.0
    %392 = vmatpush1.msra.mxu0 %v367
    %393 = vmatprep.subr.mxu0 0.0
    %394 = vmatpush1.msra.mxu0 %v368
    %395 = vmatprep.subr.mxu0 0.0
    %396 = vmatpush1.msra.mxu0 %v369
    %397 = vmatprep.subr.mxu0 0.0
    %398 = vmatpush1.msra.mxu0 %v370
    %399 = vmatprep.subr.mxu0 0.0
    %400 = vmatpush1.msra.mxu0 %v371
    %401 = vmatprep.subr.mxu0 0.0
    %402 = vmatpush1.msra.mxu0 %v372
    %403 = vmatprep.subr.mxu0 0.0
    %404 = vmatpush1.msra.mxu0 %v373
    %405 = vmatprep.subr.mxu0 0.0
    %406 = vmatpush1.msra.mxu0 %v374
    %407 = vmatprep.subr.mxu0 0.0
    %408 = vmatpush1.msra.mxu0 %v375
    %409 = vmatprep.subr.mxu0 0.0
    %410 = vmatpush1.msra.mxu0 %v376
    %411 = vmatprep.subr.mxu0 0.0
    %412 = vmatpush1.msra.mxu0 %v377
    %413 = vmatprep.subr.mxu0 0.0
    %414 = vmatpush1.msra.mxu0 %v378
    %415 = vmatprep.subr.mxu0 0.0
    %416 = vmatpush1.msra.mxu0 %v379
    %417 = vmatprep.subr.mxu0 0.0
    %418 = vmatpush1.msra.mxu0 %v380
    %419 = vmatprep.subr.mxu0 0.0
    %420 = vmatpush1.msra.mxu0 %v381
    %421 = vmatprep.subr.mxu0 0.0
    %422 = vmatpush1.msra.mxu0 0.0
    %423 = vmatprep.subr.mxu0 0.0
    %424 = vmatpush1.msra.mxu0 0.0
    %425 = vmatprep.subr.mxu0 0.0
    %426 = vmatpush1.msra.mxu0 0.0
    %427 = vmatprep.subr.mxu0 0.0
    %428 = vmatpush1.msra.mxu0 0.0
    %429 = vmatprep.subr.mxu0 0.0
    %430 = vmatpush1.msra.mxu0 0.0
    %431 = vmatprep.subr.mxu0 0.0
    %432 = vmatpush1.msra.mxu0 0.0
    %433 = vmatprep.subr.mxu0 0.0
    %434 = vmatpush1.msra.mxu0 0.0
    %435 = vmatprep.subr.mxu0 0.0
    %436 = vmatpush1.msra.mxu0 0.0
    %437 = vmatprep.subr.mxu0 0.0
    %438 = vmatpush1.msra.mxu0 0.0
    %439 = vmatprep.subr.mxu0 0.0
    %440 = vmatpush1.msra.mxu0 0.0
    %441 = vmatprep.subr.mxu0 0.0
    %442 = vmatpush1.msra.mxu0 0.0
    %443 = vmatprep.subr.mxu0 0.0
    %444 = vmatpush1.msra.mxu0 0.0
    %445 = vmatprep.subr.mxu0 0.0
    %446 = vmatpush1.msra.mxu0 0.0
    %447 = vmatprep.subr.mxu0 0.0
    %448 = vmatpush1.msra.mxu0 0.0
    %449 = vmatprep.subr.mxu0 0.0
    %450 = vmatpush1.msra.mxu0 0.0
    %451 = vmatprep.subr.mxu0 0.0
    %452 = vmatpush1.msra.mxu0 0.0
    %453 = vmatprep.mubr.f32.mxu0 0.0
    %454 = vmatmul.mubr.f32.gmra.mrb[0].mxu0 %v364
    %v455 = vpop.f32.mrb[0].mxu0
    %v456 = vadd.f32 %v387, %v455
    %v457 = vpop.f32.mrb[0].mxu0
    %458 = vmatprep.mubr.f32.mxu0 0.0
    %459 = vmatmul.mubr.f32.gmra.mrb[0].mxu0 %v365
    %v460 = vpop.f32.mrb[0].mxu0
    %v461 = vadd.f32 %v387, %v460
    %v462 = vpop.f32.mrb[0].mxu0
    %463 = vdwg.mxu0
    %464 = vst [vmem:[#allocation10] sm:$0xff] %v456
    %465 = vst [vmem:[#allocation10 + $0x8] sm:$0xff] %v461
    // Predicated region
    $region46: #{tpu_custom_call.1} parent=1 // pred_check
      _
    $region47: #{tpu_custom_call.1} parent=1 // pred_check_branch
      %467 = sbr.rel (0) target = $region49
    $region48: #{tpu_custom_call.1} parent=1 // pred_region
      %s469 = ssub.s32 256, 256
      %470 = vsyncadd [#allocation4], %s469
      %s471 = sshll.u32 [#allocation10], 4
      %s472 = int_to_ptr.vmem [resolvable:$true] %s471
      %477 = dma.vmem_to_hbm [thread:$0]  %s472, 256, %s7, [#allocation4], 128, 128, 8
    $region49: #{tpu_custom_call.1} parent=1 // pred_fallthru
      _
    // Predicated region
    $region50: #{tpu_custom_call.1} parent=1 // pred_check
      _
    $region51: #{tpu_custom_call.1} parent=1 // pred_check_branch
      %479 = sbr.rel (0) target = $region53
    $region52: #{tpu_custom_call.1} parent=1 // pred_region
      %480 = dma.done [#allocation4], 256
    $region53: #{tpu_custom_call.1} parent=1 // pred_fallthru
      _
    %481 = vsyncpa [#allocation3], 1
    %482 = vsyncpa [#allocation6], 1
    %483 = vsyncpa [#allocation9], 1
    %484 = vsyncpa [#allocation4], 1

</llo_original>
